<compile_context>
chip_gen: v7x
topology: tpu7x:2x2x1
jax: 0.10.0
libtpu: 0.0.40
codegen_flags: <defaults>
</compile_context>

<pallas_src>
import numpy as np
import jax
import jax.numpy as jnp
from jax import lax
from jax.experimental import pallas as pl
from jax.experimental.pallas import tpu as pltpu

_MAX_ROWS_PER_STEP = 256      # one-hot path: output rows per grid step
_MAX_ONEHOT_ENTITIES = 2048   # one-hot path only for small/moderate vocabs
_DMA_ROWS_PER_STEP = 32       # HBM row-gather path: rows DMA'd per grid step


def _round_up(x, m):
    return (x + m - 1) // m * m


def _vmem_budget_bytes():
    """~75% of the chip's per-core VMEM (v5e/v6e: 128 MiB, v7x: 64 MiB)."""
    try:
        cap = pltpu.get_tpu_info().vmem_capacity_bytes
    except Exception:
        cap = 64 << 20   # conservative (v7x) default if the query is unavailable
    return int(cap * 3 // 4)


def _pad_table(table):
    """Pad table rows AND cols to multiples of 128.

    Cols -> lane-dense output tiles; rows -> MXU-friendly contraction depth
    for the one-hot matmul (128 tiles the v5e MXU exactly, and tiles the
    256-wide v6e/v7x MXU in two passes)."""
    n, e = table.shape
    n_pad, e_pad = _round_up(n, 128), _round_up(e, 128)
    if (n_pad, e_pad) != (n, e):
        table = jnp.pad(table, ((0, n_pad - n), (0, e_pad - e)))
    return table


# ----------------------------------------------------------------------------
# Primary path: one-hot MXU matmul against a VMEM-resident table.
# ----------------------------------------------------------------------------
def _onehot_gather_kernel(idx_ref, emb_ref, out_ref):
    # idx_ref : VMEM (tn, 1) int32        -- row ids for this output tile
    # emb_ref : VMEM (n_ent_pad, e_pad)   -- whole padded table, single copy
    # out_ref : VMEM (tn, e_pad)          -- lane-dense output tile
    tn = out_ref.shape[0]
    n_ent = emb_ref.shape[0]
    ids = idx_ref[...]                                           # (tn, 1)
    ent = lax.broadcasted_iota(jnp.int32, (tn, n_ent), 1)        # (tn, n_ent)
    one_hot = (ids == ent).astype(emb_ref.dtype)                 # exact 0/1
    # HIGHEST -> full-f32 multi-pass matmul; with an exact 0/1 lhs this is a
    # bit-exact row gather executed on the otherwise-idle MXU.
    out_ref[...] = jnp.dot(
        one_hot, emb_ref[...],
        preferred_element_type=jnp.float32,
        precision=lax.Precision.HIGHEST).astype(out_ref.dtype)


def _lookup_onehot(idx_flat, table_padded):
    n_ent_pad, e_pad = table_padded.shape
    n = idx_flat.shape[0]
    # Cap the tile at 256 rows so big lookups give >=2 grid steps (v7x has two
    # TensorCores; "parallel" shards the grid across them).
    tn = _round_up(n, 8) if n <= _MAX_ROWS_PER_STEP else _MAX_ROWS_PER_STEP
    n_pad = _round_up(n, tn)
    idx = idx_flat.astype(jnp.int32)
    if n_pad != n:
        idx = jnp.pad(idx, (0, n_pad - n))      # padded ids -> row 0, sliced off
    idx = idx.reshape(n_pad, 1)

    itemsize = table_padded.dtype.itemsize
    table_bytes = n_ent_pad * e_pad * itemsize
    # table (single copy) + double-buffered idx/out tiles + one-hot temp + headroom
    needed = (table_bytes
              + 2 * tn * 128 * 4                 # idx block, lane-padded
              + 2 * tn * e_pad * itemsize        # output tiles (double-buffered)
              + tn * n_ent_pad * 4               # in-kernel one-hot temporary
              + (2 << 20))
    vmem_limit = int(min(_vmem_budget_bytes(), max(needed, 32 << 20)))

    bytes_accessed = table_bytes + n_pad * e_pad * itemsize + n_pad * 4
    flops = 2 * n_pad * n_ent_pad * e_pad

    return pl.pallas_call(
        _onehot_gather_kernel,
        out_shape=jax.ShapeDtypeStruct((n_pad, e_pad), table_padded.dtype),
        grid=(n_pad // tn,),
        in_specs=[
            pl.BlockSpec((tn, 1), lambda i: (i, 0)),
            # whole table resident in VMEM, single-buffered (no pipelining)
            pl.BlockSpec(memory_space=pltpu.MemorySpace.VMEM),
        ],
        out_specs=pl.BlockSpec((tn, e_pad), lambda i: (i, 0)),
        compiler_params=pltpu.CompilerParams(
            dimension_semantics=("parallel",),
            vmem_limit_bytes=vmem_limit),
        cost_estimate=pl.CostEstimate(
            flops=int(flops), transcendentals=0,
            bytes_accessed=int(bytes_accessed)),
    )(idx, table_padded)


# ----------------------------------------------------------------------------
# Secondary path: table stays in HBM; DMA-gather only the selected rows.
# Used when the vocabulary is too large to keep VMEM-resident (esp. v7x).
# ----------------------------------------------------------------------------
def _make_dma_gather_kernel(tn):
    def kernel(idx_ref, table_hbm, out_ref, buf, sems):
        # idx_ref   : SMEM (n_pad,) int32 (scalar-prefetched row ids)
        # table_hbm : HBM ref (n_ent_pad, e_pad)
        # out_ref   : VMEM (tn, e_pad) output tile
        # buf       : VMEM (tn, e_pad) scratch gather slab
        # sems      : DMA semaphores, one per row in flight
        base = pl.program_id(0) * tn
        copies = []
        for r in range(tn):                       # static: issues DMAs only
            cp = pltpu.make_async_copy(
                table_hbm.at[pl.ds(idx_ref[base + r], 1)],
                buf.at[pl.ds(r, 1)],
                sems.at[r])
            cp.start()
            copies.append(cp)
        for cp in copies:
            cp.wait()
        out_ref[...] = buf[...]
    return kernel


def _lookup_dma(idx_flat, table_padded):
    n_ent_pad, e_pad = table_padded.shape
    n = idx_flat.shape[0]
    tn = _round_up(n, 8) if n <= _DMA_ROWS_PER_STEP else _DMA_ROWS_PER_STEP
    n_pad = _round_up(n, tn)
    idx = idx_flat.astype(jnp.int32)
    if n_pad != n:
        idx = jnp.pad(idx, (0, n_pad - n))        # padded ids -> row 0, sliced off

    itemsize = table_padded.dtype.itemsize
    bytes_accessed = 2 * n_pad * e_pad * itemsize + n_pad * 4

    grid_spec = pltpu.PrefetchScalarGridSpec(
        num_scalar_prefetch=1,
        grid=(n_pad // tn,),
        in_specs=[pl.BlockSpec(memory_space=pl.ANY)],      # table stays in HBM
        out_specs=pl.BlockSpec((tn, e_pad), lambda i, idx_ref: (i, 0)),
        scratch_shapes=[pltpu.VMEM((tn, e_pad), table_padded.dtype),
                        pltpu.SemaphoreType.DMA((tn,))])
    return pl.pallas_call(
        _make_dma_gather_kernel(tn),
        out_shape=jax.ShapeDtypeStruct((n_pad, e_pad), table_padded.dtype),
        grid_spec=grid_spec,
        compiler_params=pltpu.CompilerParams(
            dimension_semantics=("parallel",)),
        cost_estimate=pl.CostEstimate(
            flops=0, transcendentals=0, bytes_accessed=int(bytes_accessed)),
    )(idx, table_padded)


def pallas_embedding_lookup(idx_flat, table_padded, n_cols=None):
    """idx_flat: (N,) int ids.  table_padded: (n_ent_pad, e_pad) f32 (padded).

    Returns (N, n_cols) gathered rows."""
    n = idx_flat.shape[0]
    n_ent_pad, e_pad = table_padded.shape
    if n_cols is None:
        n_cols = e_pad
    table_bytes = n_ent_pad * e_pad * table_padded.dtype.itemsize
    budget = _vmem_budget_bytes()
    # Small/moderate vocab -> VMEM-resident one-hot MXU gather.
    # Large vocab -> leave table in HBM and DMA only the needed rows.
    use_onehot = (n_ent_pad <= _MAX_ONEHOT_ENTITIES
                  and table_bytes <= budget // 2)
    out = _lookup_onehot(idx_flat, table_padded) if use_onehot \
        else _lookup_dma(idx_flat, table_padded)
    return out[:n, :n_cols]


class EmbeddingPallas:
    """JAX/Pallas port of the PyTorch Embedding module."""

    def __init__(self, pretrain, embedding_size=100):
        self.entities = [e for e in pretrain]
        self.entity2id = {e: i for i, e in enumerate(self.entities)}
        # stack pretrained vectors into the embedding weight (like nn.Parameter)
        self.weight = jnp.stack([jnp.asarray(pretrain[e], dtype=jnp.float32)
                                 for e in self.entities])
        # actual embedding dim comes from the pretrained vectors (as in torch,
        # where the nn.Embedding weight is replaced by the pretrain stack)
        self.embedding_size = self.weight.shape[1]
        # Pad ONCE at init (rows/cols -> multiples of 128); forward never pads.
        self.weight_padded = _pad_table(self.weight)

    def forward(self, x):
        # host-side glue: build the (B, S, 2) index tensor exactly like torch
        # TODO(synk): the entity2id dict lookup over nested Python lists has no
        # kernel equivalent; it stays host-side, as in the PyTorch module.
        idx = [[[self.entity2id[sample[0]], self.entity2id[sample[-1]]]
                for sample in batch] for batch in x]
        idx = np.asarray(idx, dtype=np.int32)          # (B, S, 2)
        B, S, two = idx.shape
        idx_flat = jnp.asarray(idx.reshape(-1))        # (B*S*2,)

        out_flat = pallas_embedding_lookup(idx_flat, self.weight_padded,
                                           n_cols=self.embedding_size)
        return out_flat.reshape(B, S, two, self.embedding_size)


if __name__ == "__main__":
    # ---- deterministic synthetic "pretrain" dict (no checkpoint files) ----
    n_entities = 16
    E = 100  # module-default embedding size (exercises lane padding to 128)
    key = jax.random.PRNGKey(0)
    table = jax.random.normal(key, (n_entities, E), dtype=jnp.float32)
    pretrain = {f"ent_{i}": np.asarray(table[i]) for i in range(n_entities)}

    model = EmbeddingPallas(pretrain)

    # ---- deterministic nested-list input x: B=2 batches, S=8 samples,
    #      each sample is a path of 3 entity names ----
    B, S = 2, 8
    names = model.entities
    x = [[[names[(b * 3 + s) % n_entities],
           names[(b + 2 * s + 1) % n_entities],
           names[(5 * b + 7 * s + 3) % n_entities]]
          for s in range(S)]
         for b in range(B)]

    out = model.forward(x)                 # one-hot MXU path (small table)
    out = jax.block_until_ready(out)

    # reference: plain JAX gather
    idx_ref = np.asarray(
        [[[model.entity2id[s[0]], model.entity2id[s[-1]]] for s in batch]
         for batch in x], dtype=np.int32)
    ref = jnp.take(model.weight, jnp.asarray(idx_ref), axis=0)
    assert out.shape == (B, S, 2, model.embedding_size)
    # One-hot @ table at HIGHEST precision is expected bit-exact; the tiny
    # tolerance only guards against matmul pass-count differences across
    # Mosaic versions.
    np.testing.assert_allclose(np.asarray(out), np.asarray(ref),
                               rtol=1e-5, atol=1e-6)

    # ---- also exercise the HBM-resident DMA row-gather path (the large-table
    #      path) on the same data; it must reproduce table rows exactly ----
    idx_flat = jnp.asarray(idx_ref.reshape(-1))
    out_dma = _lookup_dma(idx_flat, model.weight_padded)
    out_dma = jax.block_until_ready(out_dma)
    np.testing.assert_allclose(
        np.asarray(out_dma[:idx_flat.shape[0], :E]),
        np.asarray(ref).reshape(-1, E), rtol=0, atol=0)

    print("KERNEL_OK")
</pallas_src>

<mosaic_0001>
module attributes {stable_mosaic.version = 11 : i64} {
  func.func @_onehot_gather_kernel(%arg0: i32, %arg1: memref<32x1xi32, #tpu.memory_space<vmem>>, %arg2: memref<128x128xf32, #tpu.memory_space<vmem>>, %arg3: memref<32x128xf32, #tpu.memory_space<vmem>>) attributes {dimension_semantics = [#tpu.dimension_semantics<parallel>], iteration_bounds = array<i64: 1>, scalar_prefetch = 0 : i64, scratch_operands = 0 : i64, tpu.core_type = #tpu.core_type<tc>, window_params = [{transform_indices = @transform_0, window_bounds = array<i64: 32, 1>}, {pipeline_mode = #tpu.pipeline_mode<synchronous>, transform_indices = @transform_1, window_bounds = array<i64: 128, 128>}, {transform_indices = @transform_2, window_bounds = array<i64: 32, 128>}]} {
    %c0 = arith.constant 0 : index
    %c0_0 = arith.constant 0 : index
    %0 = vector.load %arg1[%c0, %c0_0] : memref<32x1xi32, #tpu.memory_space<vmem>>, vector<32x1xi32>
    %1 = tpu.iota {dimensions = array<i32: 1>} : vector<32x128xi32>
    %2 = vector.broadcast %0 : vector<32x1xi32> to vector<32x128xi32>
    %3 = arith.cmpi eq, %2, %1 : vector<32x128xi32>
    %4 = arith.extui %3 : vector<32x128xi1> to vector<32x128xi32>
    %5 = arith.sitofp %4 : vector<32x128xi32> to vector<32x128xf32>
    %c0_1 = arith.constant 0 : index
    %c0_2 = arith.constant 0 : index
    %6 = vector.load %arg2[%c0_1, %c0_2] : memref<128x128xf32, #tpu.memory_space<vmem>>, vector<128x128xf32>
    %cst = arith.constant dense<0.000000e+00> : vector<32x128xf32>
    %7 = tpu.matmul %5, %6, %cst {dimension_numbers = #tpu.dot_dimension_numbers<[1], [0], [0], [1], [0, 0, 1, 1], [], []>, precision = #tpu.contract_precision<fp32>} : vector<32x128xf32>, vector<128x128xf32>, vector<32x128xf32> -> vector<32x128xf32>
    %c0_3 = arith.constant 0 : index
    %c0_4 = arith.constant 0 : index
    %8 = vector.load %arg3[%c0_3, %c0_4] : memref<32x128xf32, #tpu.memory_space<vmem>>, vector<32x128xf32>
    tpu.vector_store %arg3[%c0_3, %c0_4], %7 {strides = array<i32>} : memref<32x128xf32, #tpu.memory_space<vmem>>, vector<32x128xf32>,
    return
  }
  func.func @transform_0(%arg0: i32) -> (i32, i32) {
    %c0_i32 = arith.constant 0 : i32
    %c0_i32_0 = arith.constant 0 : i32
    return %arg0, %c0_i32 : i32, i32
  }
  func.func @transform_1(%arg0: i32) -> (i32, i32) {
    %c0_i32 = arith.constant 0 : i32
    %c0_i32_0 = arith.constant 0 : i32
    %c0_i32_1 = arith.constant 0 : i32
    return %c0_i32, %c0_i32_0 : i32, i32
  }
  func.func @transform_2(%arg0: i32) -> (i32, i32) {
    %c0_i32 = arith.constant 0 : i32
    %c0_i32_0 = arith.constant 0 : i32
    return %arg0, %c0_i32 : i32, i32
  }
}

</mosaic_0001>

<llo_original>
// kernel: tpu_custom_call.1
$region0: #{tpu_custom_call.1}
  #allocation0 [shape = 'u32[]', space=smem, size = 0x4, offset = 0x4, fixed_abs, tag = 'smem constant byte address 0x4 - core index']
  #allocation1 [shape = 'u32[144,128]{1,0:T(1,128)}', space=vmem, size = 0x12000, scoped, tag = 'internal scratch']
  %s0 = inlined_call_operand.vmem [shape: s32[32,1], index: 0, kind: input, shape index: {}]
  %s1 = inlined_call_operand.hbm [shape: f32[128,128], index: 1, kind: input, shape index: {}]
  %s2 = inlined_call_operand.hbm [shape: f32[32,128], index: 2, kind: output, shape index: {}]
  %s3 = sld [smem:[#allocation0]]
  $region22: #{tpu_custom_call.1} parent=0
    _
  %s5 = ssub.s32 1, %s3
  %s6 = scalar_select 0, %s5, %s3
  $region1: #{tpu_custom_call.1} parent=0
    #allocation2 [shape = 'u8[65536]{0}', space=vmem, size = 0x10000, scoped, tag = 'input window, operand 1, single buffered']
    #allocation3 [shape = 's32[1]{0}', space=sflag, size = 0x4, scoped, tag = 'scoped memory for tpu_custom_call.1']
    #allocation4 [shape = 's32[1]{0}', space=sflag, size = 0x4, scoped, tag = 'scoped memory for tpu_custom_call.1']
    #allocation5 [shape = 'u8[16384]{0}', space=vmem, size = 0x4000, scoped, tag = 'output window, operand 0, single buffered']
    %7 = vsyncpa [#allocation3], 0
    %8 = vsyncpa [#allocation4], 0
    // Predicated region
    $region2: #{tpu_custom_call.1} parent=1 // pred_check
      _
    $region3: #{tpu_custom_call.1} parent=1 // pred_check_branch
      %10 = sbr.rel (0) target = $region5
    $region4: #{tpu_custom_call.1} parent=1 // pred_region
      _
    $region5: #{tpu_custom_call.1} parent=1 // pred_fallthru
      _
    // Predicated region
    $region6: #{tpu_custom_call.1} parent=1 // pred_check
      _
    $region7: #{tpu_custom_call.1} parent=1 // pred_check_branch
      %12 = sbr.rel (0) target = $region9
    $region8: #{tpu_custom_call.1} parent=1 // pred_region
      %s14 = ssub.s32 2048, 2048
      %15 = vsyncadd [#allocation3], %s14
      %s16 = sshll.u32 [#allocation2], 4
      %s17 = int_to_ptr.vmem [resolvable:$true] %s16
      %22 = dma.hbm_to_vmem [thread:$0]  %s1, 2048, %s17, [#allocation3], 128, 128, 8
    $region9: #{tpu_custom_call.1} parent=1 // pred_fallthru
      _
    // Predicated region
    $region10: #{tpu_custom_call.1} parent=1 // pred_check
      _
    $region11: #{tpu_custom_call.1} parent=1 // pred_check_branch
      %24 = sbr.rel (0) target = $region13
    $region12: #{tpu_custom_call.1} parent=1 // pred_region
      %25 = dma.done [#allocation3], 2048
    $region13: #{tpu_custom_call.1} parent=1 // pred_fallthru
      _
    %v26 = vld [vmem:[%s0] sm:$0xff]
    %v27 = vld [vmem:[%s0 + $0x8] sm:$0xff]
    %v28 = vld [vmem:[%s0 + $0x10] sm:$0xff]
    %v29 = vld [vmem:[%s0 + $0x18] sm:$0xff]
    %v30 = vlaneseq
    %v31 = vand.u32 %v30, 127
    %32 = vset.pattern.permute.xlu0 0
    %33 = vperm.xlu0 %32, %v26
    %v34 = vpop.permute.xlu0 %33
    %35 = vset.pattern.permute.xlu0 0
    %36 = vperm.xlu0 %35, %v27
    %v37 = vpop.permute.xlu0 %36
    %38 = vset.pattern.permute.xlu0 0
    %39 = vperm.xlu0 %38, %v28
    %v40 = vpop.permute.xlu0 %39
    %41 = vset.pattern.permute.xlu0 0
    %42 = vperm.xlu0 %41, %v29
    %v43 = vpop.permute.xlu0 %42
    %vm44 = vcmp.eq.s32.totalorder %v34, %v31
    %vm45 = vcmp.eq.s32.totalorder %v37, %v31
    %vm46 = vcmp.eq.s32.totalorder %v40, %v31
    %vm47 = vcmp.eq.s32.totalorder %v43, %v31
    %v48 = vsel %vm44, 1, 0
    %v49 = vsel %vm45, 1, 0
    %v50 = vsel %vm46, 1, 0
    %v51 = vsel %vm47, 1, 0
    %v52 = vcvt.s32.f32 %v48
    %v53 = vcvt.s32.f32 %v49
    %v54 = vcvt.s32.f32 %v50
    %v55 = vcvt.s32.f32 %v51
    %v56 = vld [vmem:[#allocation2] sm:$0xff]
    %v57 = vld [vmem:[#allocation2 + $0x8] sm:$0xff]
    %v58 = vld [vmem:[#allocation2 + $0x10] sm:$0xff]
    %v59 = vld [vmem:[#allocation2 + $0x18] sm:$0xff]
    %v60 = vld [vmem:[#allocation2 + $0x20] sm:$0xff]
    %v61 = vld [vmem:[#allocation2 + $0x28] sm:$0xff]
    %v62 = vld [vmem:[#allocation2 + $0x30] sm:$0xff]
    %v63 = vld [vmem:[#allocation2 + $0x38] sm:$0xff]
    %v64 = vld [vmem:[#allocation2 + $0x40] sm:$0xff]
    %v65 = vld [vmem:[#allocation2 + $0x48] sm:$0xff]
    %v66 = vld [vmem:[#allocation2 + $0x50] sm:$0xff]
    %v67 = vld [vmem:[#allocation2 + $0x58] sm:$0xff]
    %v68 = vld [vmem:[#allocation2 + $0x60] sm:$0xff]
    %v69 = vld [vmem:[#allocation2 + $0x68] sm:$0xff]
    %v70 = vld [vmem:[#allocation2 + $0x70] sm:$0xff]
    %v71 = vld [vmem:[#allocation2 + $0x78] sm:$0xff]
    %72 = vmatprep.subr.mxu0 0.0
    %v73 = vand.u32 %v56, 4294901760
    %74 = vmatpush1.msra.mxu0 %v73
    %75 = vmatprep.subr.mxu0 0.0
    %v76 = vand.u32 %v57, 4294901760
    %77 = vmatpush1.msra.mxu0 %v76
    %78 = vmatprep.subr.mxu0 0.0
    %v79 = vand.u32 %v58, 4294901760
    %80 = vmatpush1.msra.mxu0 %v79
    %81 = vmatprep.subr.mxu0 0.0
    %v82 = vand.u32 %v59, 4294901760
    %83 = vmatpush1.msra.mxu0 %v82
    %84 = vmatprep.subr.mxu0 0.0
    %v85 = vand.u32 %v60, 4294901760
    %86 = vmatpush1.msra.mxu0 %v85
    %87 = vmatprep.subr.mxu0 0.0
    %v88 = vand.u32 %v61, 4294901760
    %89 = vmatpush1.msra.mxu0 %v88
    %90 = vmatprep.subr.mxu0 0.0
    %v91 = vand.u32 %v62, 4294901760
    %92 = vmatpush1.msra.mxu0 %v91
    %93 = vmatprep.subr.mxu0 0.0
    %v94 = vand.u32 %v63, 4294901760
    %95 = vmatpush1.msra.mxu0 %v94
    %96 = vmatprep.subr.mxu0 0.0
    %v97 = vand.u32 %v64, 4294901760
    %98 = vmatpush1.msra.mxu0 %v97
    %99 = vmatprep.subr.mxu0 0.0
    %v100 = vand.u32 %v65, 4294901760
    %101 = vmatpush1.msra.mxu0 %v100
    %102 = vmatprep.subr.mxu0 0.0
    %v103 = vand.u32 %v66, 4294901760
    %104 = vmatpush1.msra.mxu0 %v103
    %105 = vmatprep.subr.mxu0 0.0
    %v106 = vand.u32 %v67, 4294901760
    %107 = vmatpush1.msra.mxu0 %v106
    %108 = vmatprep.subr.mxu0 0.0
    %v109 = vand.u32 %v68, 4294901760
    %110 = vmatpush1.msra.mxu0 %v109
    %111 = vmatprep.subr.mxu0 0.0
    %v112 = vand.u32 %v69, 4294901760
    %113 = vmatpush1.msra.mxu0 %v112
    %114 = vmatprep.subr.mxu0 0.0
    %v115 = vand.u32 %v70, 4294901760
    %116 = vmatpush1.msra.mxu0 %v115
    %117 = vmatprep.subr.mxu0 0.0
    %v118 = vand.u32 %v71, 4294901760
    %119 = vmatpush1.msra.mxu0 %v118
    %120 = vmatprep.subr.mxu0 0.0
    %121 = vmatpush1.msra.mxu0 0.0
    %122 = vmatprep.subr.mxu0 0.0
    %123 = vmatpush1.msra.mxu0 0.0
    %124 = vmatprep.subr.mxu0 0.0
    %125 = vmatpush1.msra.mxu0 0.0
    %126 = vmatprep.subr.mxu0 0.0
    %127 = vmatpush1.msra.mxu0 0.0
    %128 = vmatprep.subr.mxu0 0.0
    %129 = vmatpush1.msra.mxu0 0.0
    %130 = vmatprep.subr.mxu0 0.0
    %131 = vmatpush1.msra.mxu0 0.0
    %132 = vmatprep.subr.mxu0 0.0
    %133 = vmatpush1.msra.mxu0 0.0
    %134 = vmatprep.subr.mxu0 0.0
    %135 = vmatpush1.msra.mxu0 0.0
    %136 = vmatprep.subr.mxu0 0.0
    %137 = vmatpush1.msra.mxu0 0.0
    %138 = vmatprep.subr.mxu0 0.0
    %139 = vmatpush1.msra.mxu0 0.0
    %140 = vmatprep.subr.mxu0 0.0
    %141 = vmatpush1.msra.mxu0 0.0
    %142 = vmatprep.subr.mxu0 0.0
    %143 = vmatpush1.msra.mxu0 0.0
    %144 = vmatprep.subr.mxu0 0.0
    %145 = vmatpush1.msra.mxu0 0.0
    %146 = vmatprep.subr.mxu0 0.0
    %147 = vmatpush1.msra.mxu0 0.0
    %148 = vmatprep.subr.mxu0 0.0
    %149 = vmatpush1.msra.mxu0 0.0
    %150 = vmatprep.subr.mxu0 0.0
    %151 = vmatpush1.msra.mxu0 0.0
    %152 = vmatprep.mubr.f32.mxu0 0.0
    %v153 = vand.u32 %v52, 4294901760
    %v154 = vsub.f32 %v52, %v153
    %v155 = vand.u32 %v154, 4294901760
    %v156 = vsub.f32 %v154, %v155
    %v157 = vand.u32 %v156, 4294901760
    %158 = vmatmul.mubr.f32.gmra.mrb[0].mxu0 %v157
    %v159 = vpop.f32.mrb[0].mxu0
    %v160 = vadd.f32 0.0, %v159
    %v161 = vpop.f32.mrb[0].mxu0
    %162 = vmatprep.mubr.f32.mxu0 0.0
    %v163 = vand.u32 %v53, 4294901760
    %v164 = vsub.f32 %v53, %v163
    %v165 = vand.u32 %v164, 4294901760
    %v166 = vsub.f32 %v164, %v165
    %v167 = vand.u32 %v166, 4294901760
    %168 = vmatmul.mubr.f32.gmra.mrb[0].mxu0 %v167
    %v169 = vpop.f32.mrb[0].mxu0
    %v170 = vadd.f32 0.0, %v169
    %v171 = vpop.f32.mrb[0].mxu0
    %172 = vmatprep.mubr.f32.mxu0 0.0
    %v173 = vand.u32 %v54, 4294901760
    %v174 = vsub.f32 %v54, %v173
    %v175 = vand.u32 %v174, 4294901760
    %v176 = vsub.f32 %v174, %v175
    %v177 = vand.u32 %v176, 4294901760
    %178 = vmatmul.mubr.f32.gmra.mrb[0].mxu0 %v177
    %v179 = vpop.f32.mrb[0].mxu0
    %v180 = vadd.f32 0.0, %v179
    %v181 = vpop.f32.mrb[0].mxu0
    %182 = vmatprep.mubr.f32.mxu0 0.0
    %v183 = vand.u32 %v55, 4294901760
    %v184 = vsub.f32 %v55, %v183
    %v185 = vand.u32 %v184, 4294901760
    %v186 = vsub.f32 %v184, %v185
    %v187 = vand.u32 %v186, 4294901760
    %188 = vmatmul.mubr.f32.gmra.mrb[0].mxu0 %v187
    %v189 = vpop.f32.mrb[0].mxu0
    %v190 = vadd.f32 0.0, %v189
    %v191 = vpop.f32.mrb[0].mxu0
    %192 = vdwg.mxu0
    %193 = vmatprep.subr.mxu0 0.0
    %v194 = vand.u32 %v56, 4294901760
    %v195 = vsub.f32 %v56, %v194
    %v196 = vand.u32 %v195, 4294901760
    %v197 = vsub.f32 %v195, %v196
    %v198 = vand.u32 %v197, 4294901760
    %199 = vmatpush1.msra.mxu0 %v198
    %200 = vmatprep.subr.mxu0 0.0
    %v201 = vand.u32 %v57, 4294901760
    %v202 = vsub.f32 %v57, %v201
    %v203 = vand.u32 %v202, 4294901760
    %v204 = vsub.f32 %v202, %v203
    %v205 = vand.u32 %v204, 4294901760
    %206 = vmatpush1.msra.mxu0 %v205
    %207 = vmatprep.subr.mxu0 0.0
    %v208 = vand.u32 %v58, 4294901760
    %v209 = vsub.f32 %v58, %v208
    %v210 = vand.u32 %v209, 4294901760
    %v211 = vsub.f32 %v209, %v210
    %v212 = vand.u32 %v211, 4294901760
    %213 = vmatpush1.msra.mxu0 %v212
    %214 = vmatprep.subr.mxu0 0.0
    %v215 = vand.u32 %v59, 4294901760
    %v216 = vsub.f32 %v59, %v215
    %v217 = vand.u32 %v216, 4294901760
    %v218 = vsub.f32 %v216, %v217
    %v219 = vand.u32 %v218, 4294901760
    %220 = vmatpush1.msra.mxu0 %v219
    %221 = vmatprep.subr.mxu0 0.0
    %v222 = vand.u32 %v60, 4294901760
    %v223 = vsub.f32 %v60, %v222
    %v224 = vand.u32 %v223, 4294901760
    %v225 = vsub.f32 %v223, %v224
    %v226 = vand.u32 %v225, 4294901760
    %227 = vmatpush1.msra.mxu0 %v226
    %228 = vmatprep.subr.mxu0 0.0
    %v229 = vand.u32 %v61, 4294901760
    %v230 = vsub.f32 %v61, %v229
    %v231 = vand.u32 %v230, 4294901760
    %v232 = vsub.f32 %v230, %v231
    %v233 = vand.u32 %v232, 4294901760
    %234 = vmatpush1.msra.mxu0 %v233
    %235 = vmatprep.subr.mxu0 0.0
    %v236 = vand.u32 %v62, 4294901760
    %v237 = vsub.f32 %v62, %v236
    %v238 = vand.u32 %v237, 4294901760
    %v239 = vsub.f32 %v237, %v238
    %v240 = vand.u32 %v239, 4294901760
    %241 = vmatpush1.msra.mxu0 %v240
    %242 = vmatprep.subr.mxu0 0.0
    %v243 = vand.u32 %v63, 4294901760
    %v244 = vsub.f32 %v63, %v243
    %v245 = vand.u32 %v244, 4294901760
    %v246 = vsub.f32 %v244, %v245
    %v247 = vand.u32 %v246, 4294901760
    %248 = vmatpush1.msra.mxu0 %v247
    %249 = vmatprep.subr.mxu0 0.0
    %v250 = vand.u32 %v64, 4294901760
    %v251 = vsub.f32 %v64, %v250
    %v252 = vand.u32 %v251, 4294901760
    %v253 = vsub.f32 %v251, %v252
    %v254 = vand.u32 %v253, 4294901760
    %255 = vmatpush1.msra.mxu0 %v254
    %256 = vmatprep.subr.mxu0 0.0
    %v257 = vand.u32 %v65, 4294901760
    %v258 = vsub.f32 %v65, %v257
    %v259 = vand.u32 %v258, 4294901760
    %v260 = vsub.f32 %v258, %v259
    %v261 = vand.u32 %v260, 4294901760
    %262 = vmatpush1.msra.mxu0 %v261
    %263 = vmatprep.subr.mxu0 0.0
    %v264 = vand.u32 %v66, 4294901760
    %v265 = vsub.f32 %v66, %v264
    %v266 = vand.u32 %v265, 4294901760
    %v267 = vsub.f32 %v265, %v266
    %v268 = vand.u32 %v267, 4294901760
    %269 = vmatpush1.msra.mxu0 %v268
    %270 = vmatprep.subr.mxu0 0.0
    %v271 = vand.u32 %v67, 4294901760
    %v272 = vsub.f32 %v67, %v271
    %v273 = vand.u32 %v272, 4294901760
    %v274 = vsub.f32 %v272, %v273
    %v275 = vand.u32 %v274, 4294901760
    %276 = vmatpush1.msra.mxu0 %v275
    %277 = vmatprep.subr.mxu0 0.0
    %v278 = vand.u32 %v68, 4294901760
    %v279 = vsub.f32 %v68, %v278
    %v280 = vand.u32 %v279, 4294901760
    %v281 = vsub.f32 %v279, %v280
    %v282 = vand.u32 %v281, 4294901760
    %283 = vmatpush1.msra.mxu0 %v282
    %284 = vmatprep.subr.mxu0 0.0
    %v285 = vand.u32 %v69, 4294901760
    %v286 = vsub.f32 %v69, %v285
    %v287 = vand.u32 %v286, 4294901760
    %v288 = vsub.f32 %v286, %v287
    %v289 = vand.u32 %v288, 4294901760
    %290 = vmatpush1.msra.mxu0 %v289
    %291 = vmatprep.subr.mxu0 0.0
    %v292 = vand.u32 %v70, 4294901760
    %v293 = vsub.f32 %v70, %v292
    %v294 = vand.u32 %v293, 4294901760
    %v295 = vsub.f32 %v293, %v294
    %v296 = vand.u32 %v295, 4294901760
    %297 = vmatpush1.msra.mxu0 %v296
    %298 = vmatprep.subr.mxu0 0.0
    %v299 = vand.u32 %v71, 4294901760
    %v300 = vsub.f32 %v71, %v299
    %v301 = vand.u32 %v300, 4294901760
    %v302 = vsub.f32 %v300, %v301
    %v303 = vand.u32 %v302, 4294901760
    %304 = vmatpush1.msra.mxu0 %v303
    %305 = vmatprep.subr.mxu0 0.0
    %306 = vmatpush1.msra.mxu0 0.0
    %307 = vmatprep.subr.mxu0 0.0
    %308 = vmatpush1.msra.mxu0 0.0
    %309 = vmatprep.subr.mxu0 0.0
    %310 = vmatpush1.msra.mxu0 0.0
    %311 = vmatprep.subr.mxu0 0.0
    %312 = vmatpush1.msra.mxu0 0.0
    %313 = vmatprep.subr.mxu0 0.0
    %314 = vmatpush1.msra.mxu0 0.0
    %315 = vmatprep.subr.mxu0 0.0
    %316 = vmatpush1.msra.mxu0 0.0
    %317 = vmatprep.subr.mxu0 0.0
    %318 = vmatpush1.msra.mxu0 0.0
    %319 = vmatprep.subr.mxu0 0.0
    %320 = vmatpush1.msra.mxu0 0.0
    %321 = vmatprep.subr.mxu0 0.0
    %322 = vmatpush1.msra.mxu0 0.0
    %323 = vmatprep.subr.mxu0 0.0
    %324 = vmatpush1.msra.mxu0 0.0
    %325 = vmatprep.subr.mxu0 0.0
    %326 = vmatpush1.msra.mxu0 0.0
    %327 = vmatprep.subr.mxu0 0.0
    %328 = vmatpush1.msra.mxu0 0.0
    %329 = vmatprep.subr.mxu0 0.0
    %330 = vmatpush1.msra.mxu0 0.0
    %331 = vmatprep.subr.mxu0 0.0
    %332 = vmatpush1.msra.mxu0 0.0
    %333 = vmatprep.subr.mxu0 0.0
    %334 = vmatpush1.msra.mxu0 0.0
    %335 = vmatprep.subr.mxu0 0.0
    %336 = vmatpush1.msra.mxu0 0.0
    %337 = vmatprep.mubr.f32.mxu0 0.0
    %v338 = vand.u32 %v52, 4294901760
    %339 = vmatmul.mubr.f32.gmra.mrb[0].mxu0 %v338
    %v340 = vpop.f32.mrb[0].mxu0
    %v341 = vadd.f32 %v160, %v340
    %v342 = vpop.f32.mrb[0].mxu0
    %343 = vmatprep.mubr.f32.mxu0 0.0
    %v344 = vand.u32 %v53, 4294901760
    %345 = vmatmul.mubr.f32.gmra.mrb[0].mxu0 %v344
    %v346 = vpop.f32.mrb[0].mxu0
    %v347 = vadd.f32 %v170, %v346
    %v348 = vpop.f32.mrb[0].mxu0
    %349 = vmatprep.mubr.f32.mxu0 0.0
    %v350 = vand.u32 %v54, 4294901760
    %351 = vmatmul.mubr.f32.gmra.mrb[0].mxu0 %v350
    %v352 = vpop.f32.mrb[0].mxu0
    %v353 = vadd.f32 %v180, %v352
    %v354 = vpop.f32.mrb[0].mxu0
    %355 = vmatprep.mubr.f32.mxu0 0.0
    %v356 = vand.u32 %v55, 4294901760
    %357 = vmatmul.mubr.f32.gmra.mrb[0].mxu0 %v356
    %v358 = vpop.f32.mrb[0].mxu0
    %v359 = vadd.f32 %v190, %v358
    %v360 = vpop.f32.mrb[0].mxu0
    %361 = vdwg.mxu0
    %362 = vmatprep.subr.mxu0 0.0
    %v363 = vand.u32 %v56, 4294901760
    %v364 = vsub.f32 %v56, %v363
    %365 = vmatpush1.msra.mxu0 %v364
    %366 = vmatprep.subr.mxu0 0.0
    %v367 = vand.u32 %v57, 4294901760
    %v368 = vsub.f32 %v57, %v367
    %369 = vmatpush1.msra.mxu0 %v368
    %370 = vmatprep.subr.mxu0 0.0
    %v371 = vand.u32 %v58, 4294901760
    %v372 = vsub.f32 %v58, %v371
    %373 = vmatpush1.msra.mxu0 %v372
    %374 = vmatprep.subr.mxu0 0.0
    %v375 = vand.u32 %v59, 4294901760
    %v376 = vsub.f32 %v59, %v375
    %377 = vmatpush1.msra.mxu0 %v376
    %378 = vmatprep.subr.mxu0 0.0
    %v379 = vand.u32 %v60, 4294901760
    %v380 = vsub.f32 %v60, %v379
    %381 = vmatpush1.msra.mxu0 %v380
    %382 = vmatprep.subr.mxu0 0.0
    %v383 = vand.u32 %v61, 4294901760
    %v384 = vsub.f32 %v61, %v383
    %385 = vmatpush1.msra.mxu0 %v384
    %386 = vmatprep.subr.mxu0 0.0
    %v387 = vand.u32 %v62, 4294901760
    %v388 = vsub.f32 %v62, %v387
    %389 = vmatpush1.msra.mxu0 %v388
    %390 = vmatprep.subr.mxu0 0.0
    %v391 = vand.u32 %v63, 4294901760
    %v392 = vsub.f32 %v63, %v391
    %393 = vmatpush1.msra.mxu0 %v392
    %394 = vmatprep.subr.mxu0 0.0
    %v395 = vand.u32 %v64, 4294901760
    %v396 = vsub.f32 %v64, %v395
    %397 = vmatpush1.msra.mxu0 %v396
    %398 = vmatprep.subr.mxu0 0.0
    %v399 = vand.u32 %v65, 4294901760
    %v400 = vsub.f32 %v65, %v399
    %401 = vmatpush1.msra.mxu0 %v400
    %402 = vmatprep.subr.mxu0 0.0
    %v403 = vand.u32 %v66, 4294901760
    %v404 = vsub.f32 %v66, %v403
    %405 = vmatpush1.msra.mxu0 %v404
    %406 = vmatprep.subr.mxu0 0.0
    %v407 = vand.u32 %v67, 4294901760
    %v408 = vsub.f32 %v67, %v407
    %409 = vmatpush1.msra.mxu0 %v408
    %410 = vmatprep.subr.mxu0 0.0
    %v411 = vand.u32 %v68, 4294901760
    %v412 = vsub.f32 %v68, %v411
    %413 = vmatpush1.msra.mxu0 %v412
    %414 = vmatprep.subr.mxu0 0.0
    %v415 = vand.u32 %v69, 4294901760
    %v416 = vsub.f32 %v69, %v415
    %417 = vmatpush1.msra.mxu0 %v416
    %418 = vmatprep.subr.mxu0 0.0
    %v419 = vand.u32 %v70, 4294901760
    %v420 = vsub.f32 %v70, %v419
    %421 = vmatpush1.msra.mxu0 %v420
    %422 = vmatprep.subr.mxu0 0.0
    %v423 = vand.u32 %v71, 4294901760
    %v424 = vsub.f32 %v71, %v423
    %425 = vmatpush1.msra.mxu0 %v424
    %426 = vmatprep.subr.mxu0 0.0
    %427 = vmatpush1.msra.mxu0 0.0
    %428 = vmatprep.subr.mxu0 0.0
    %429 = vmatpush1.msra.mxu0 0.0
    %430 = vmatprep.subr.mxu0 0.0
    %431 = vmatpush1.msra.mxu0 0.0
    %432 = vmatprep.subr.mxu0 0.0
    %433 = vmatpush1.msra.mxu0 0.0
    %434 = vmatprep.subr.mxu0 0.0
    %435 = vmatpush1.msra.mxu0 0.0
    %436 = vmatprep.subr.mxu0 0.0
    %437 = vmatpush1.msra.mxu0 0.0
    %438 = vmatprep.subr.mxu0 0.0
    %439 = vmatpush1.msra.mxu0 0.0
    %440 = vmatprep.subr.mxu0 0.0
    %441 = vmatpush1.msra.mxu0 0.0
    %442 = vmatprep.subr.mxu0 0.0
    %443 = vmatpush1.msra.mxu0 0.0
    %444 = vmatprep.subr.mxu0 0.0
    %445 = vmatpush1.msra.mxu0 0.0
    %446 = vmatprep.subr.mxu0 0.0
    %447 = vmatpush1.msra.mxu0 0.0
    %448 = vmatprep.subr.mxu0 0.0
    %449 = vmatpush1.msra.mxu0 0.0
    %450 = vmatprep.subr.mxu0 0.0
    %451 = vmatpush1.msra.mxu0 0.0
    %452 = vmatprep.subr.mxu0 0.0
    %453 = vmatpush1.msra.mxu0 0.0
    %454 = vmatprep.subr.mxu0 0.0
    %455 = vmatpush1.msra.mxu0 0.0
    %456 = vmatprep.subr.mxu0 0.0
    %457 = vmatpush1.msra.mxu0 0.0
    %458 = vmatprep.mubr.f32.mxu0 0.0
    %v459 = vand.u32 %v52, 4294901760
    %v460 = vsub.f32 %v52, %v459
    %461 = vmatmul.mubr.f32.gmra.mrb[0].mxu0 %v460
    %v462 = vpop.f32.mrb[0].mxu0
    %v463 = vadd.f32 %v341, %v462
    %v464 = vpop.f32.mrb[0].mxu0
    %465 = vmatprep.mubr.f32.mxu0 0.0
    %v466 = vand.u32 %v53, 4294901760
    %v467 = vsub.f32 %v53, %v466
    %468 = vmatmul.mubr.f32.gmra.mrb[0].mxu0 %v467
    %v469 = vpop.f32.mrb[0].mxu0
    %v470 = vadd.f32 %v347, %v469
    %v471 = vpop.f32.mrb[0].mxu0
    %472 = vmatprep.mubr.f32.mxu0 0.0
    %v473 = vand.u32 %v54, 4294901760
    %v474 = vsub.f32 %v54, %v473
    %475 = vmatmul.mubr.f32.gmra.mrb[0].mxu0 %v474
    %v476 = vpop.f32.mrb[0].mxu0
    %v477 = vadd.f32 %v353, %v476
    %v478 = vpop.f32.mrb[0].mxu0
    %479 = vmatprep.mubr.f32.mxu0 0.0
    %v480 = vand.u32 %v55, 4294901760
    %v481 = vsub.f32 %v55, %v480
    %482 = vmatmul.mubr.f32.gmra.mrb[0].mxu0 %v481
    %v483 = vpop.f32.mrb[0].mxu0
    %v484 = vadd.f32 %v359, %v483
    %v485 = vpop.f32.mrb[0].mxu0
    %486 = vdwg.mxu0
    %487 = vmatprep.subr.mxu0 0.0
    %v488 = vand.u32 %v56, 4294901760
    %489 = vmatpush1.msra.mxu0 %v488
    %490 = vmatprep.subr.mxu0 0.0
    %v491 = vand.u32 %v57, 4294901760
    %492 = vmatpush1.msra.mxu0 %v491
    %493 = vmatprep.subr.mxu0 0.0
    %v494 = vand.u32 %v58, 4294901760
    %495 = vmatpush1.msra.mxu0 %v494
    %496 = vmatprep.subr.mxu0 0.0
    %v497 = vand.u32 %v59, 4294901760
    %498 = vmatpush1.msra.mxu0 %v497
    %499 = vmatprep.subr.mxu0 0.0
    %v500 = vand.u32 %v60, 4294901760
    %501 = vmatpush1.msra.mxu0 %v500
    %502 = vmatprep.subr.mxu0 0.0
    %v503 = vand.u32 %v61, 4294901760
    %504 = vmatpush1.msra.mxu0 %v503
    %505 = vmatprep.subr.mxu0 0.0
    %v506 = vand.u32 %v62, 4294901760
    %507 = vmatpush1.msra.mxu0 %v506
    %508 = vmatprep.subr.mxu0 0.0
    %v509 = vand.u32 %v63, 4294901760
    %510 = vmatpush1.msra.mxu0 %v509
    %511 = vmatprep.subr.mxu0 0.0
    %v512 = vand.u32 %v64, 4294901760
    %513 = vmatpush1.msra.mxu0 %v512
    %514 = vmatprep.subr.mxu0 0.0
    %v515 = vand.u32 %v65, 4294901760
    %516 = vmatpush1.msra.mxu0 %v515
    %517 = vmatprep.subr.mxu0 0.0
    %v518 = vand.u32 %v66, 4294901760
    %519 = vmatpush1.msra.mxu0 %v518
    %520 = vmatprep.subr.mxu0 0.0
    %v521 = vand.u32 %v67, 4294901760
    %522 = vmatpush1.msra.mxu0 %v521
    %523 = vmatprep.subr.mxu0 0.0
    %v524 = vand.u32 %v68, 4294901760
    %525 = vmatpush1.msra.mxu0 %v524
    %526 = vmatprep.subr.mxu0 0.0
    %v527 = vand.u32 %v69, 4294901760
    %528 = vmatpush1.msra.mxu0 %v527
    %529 = vmatprep.subr.mxu0 0.0
    %v530 = vand.u32 %v70, 4294901760
    %531 = vmatpush1.msra.mxu0 %v530
    %532 = vmatprep.subr.mxu0 0.0
    %v533 = vand.u32 %v71, 4294901760
    %534 = vmatpush1.msra.mxu0 %v533
    %535 = vmatprep.subr.mxu0 0.0
    %536 = vmatpush1.msra.mxu0 0.0
    %537 = vmatprep.subr.mxu0 0.0
    %538 = vmatpush1.msra.mxu0 0.0
    %539 = vmatprep.subr.mxu0 0.0
    %540 = vmatpush1.msra.mxu0 0.0
    %541 = vmatprep.subr.mxu0 0.0
    %542 = vmatpush1.msra.mxu0 0.0
    %543 = vmatprep.subr.mxu0 0.0
    %544 = vmatpush1.msra.mxu0 0.0
    %545 = vmatprep.subr.mxu0 0.0
    %546 = vmatpush1.msra.mxu0 0.0
    %547 = vmatprep.subr.mxu0 0.0
    %548 = vmatpush1.msra.mxu0 0.0
    %549 = vmatprep.subr.mxu0 0.0
    %550 = vmatpush1.msra.mxu0 0.0
    %551 = vmatprep.subr.mxu0 0.0
    %552 = vmatpush1.msra.mxu0 0.0
    %553 = vmatprep.subr.mxu0 0.0
    %554 = vmatpush1.msra.mxu0 0.0
    %555 = vmatprep.subr.mxu0 0.0
    %556 = vmatpush1.msra.mxu0 0.0
    %557 = vmatprep.subr.mxu0 0.0
    %558 = vmatpush1.msra.mxu0 0.0
    %559 = vmatprep.subr.mxu0 0.0
    %560 = vmatpush1.msra.mxu0 0.0
    %561 = vmatprep.subr.mxu0 0.0
    %562 = vmatpush1.msra.mxu0 0.0
    %563 = vmatprep.subr.mxu0 0.0
    %564 = vmatpush1.msra.mxu0 0.0
    %565 = vmatprep.subr.mxu0 0.0
    %566 = vmatpush1.msra.mxu0 0.0
    %567 = vmatprep.mubr.f32.mxu0 0.0
    %v568 = vand.u32 %v52, 4294901760
    %v569 = vsub.f32 %v52, %v568
    %v570 = vand.u32 %v569, 4294901760
    %571 = vmatmul.mubr.f32.gmra.mrb[0].mxu0 %v570
    %v572 = vpop.f32.mrb[0].mxu0
    %v573 = vadd.f32 %v463, %v572
    %v574 = vpop.f32.mrb[0].mxu0
    %575 = vmatprep.mubr.f32.mxu0 0.0
    %v576 = vand.u32 %v53, 4294901760
    %v577 = vsub.f32 %v53, %v576
    %v578 = vand.u32 %v577, 4294901760
    %579 = vmatmul.mubr.f32.gmra.mrb[0].mxu0 %v578
    %v580 = vpop.f32.mrb[0].mxu0
    %v581 = vadd.f32 %v470, %v580
    %v582 = vpop.f32.mrb[0].mxu0
    %583 = vmatprep.mubr.f32.mxu0 0.0
    %v584 = vand.u32 %v54, 4294901760
    %v585 = vsub.f32 %v54, %v584
    %v586 = vand.u32 %v585, 4294901760
    %587 = vmatmul.mubr.f32.gmra.mrb[0].mxu0 %v586
    %v588 = vpop.f32.mrb[0].mxu0
    %v589 = vadd.f32 %v477, %v588
    %v590 = vpop.f32.mrb[0].mxu0
    %591 = vmatprep.mubr.f32.mxu0 0.0
    %v592 = vand.u32 %v55, 4294901760
    %v593 = vsub.f32 %v55, %v592
    %v594 = vand.u32 %v593, 4294901760
    %595 = vmatmul.mubr.f32.gmra.mrb[0].mxu0 %v594
    %v596 = vpop.f32.mrb[0].mxu0
    %v597 = vadd.f32 %v484, %v596
    %v598 = vpop.f32.mrb[0].mxu0
    %599 = vdwg.mxu0
    %600 = vmatprep.subr.mxu0 0.0
    %v601 = vand.u32 %v56, 4294901760
    %v602 = vsub.f32 %v56, %v601
    %v603 = vand.u32 %v602, 4294901760
    %604 = vmatpush1.msra.mxu0 %v603
    %605 = vmatprep.subr.mxu0 0.0
    %v606 = vand.u32 %v57, 4294901760
    %v607 = vsub.f32 %v57, %v606
    %v608 = vand.u32 %v607, 4294901760
    %609 = vmatpush1.msra.mxu0 %v608
    %610 = vmatprep.subr.mxu0 0.0
    %v611 = vand.u32 %v58, 4294901760
    %v612 = vsub.f32 %v58, %v611
    %v613 = vand.u32 %v612, 4294901760
    %614 = vmatpush1.msra.mxu0 %v613
    %615 = vmatprep.subr.mxu0 0.0
    %v616 = vand.u32 %v59, 4294901760
    %v617 = vsub.f32 %v59, %v616
    %v618 = vand.u32 %v617, 4294901760
    %619 = vmatpush1.msra.mxu0 %v618
    %620 = vmatprep.subr.mxu0 0.0
    %v621 = vand.u32 %v60, 4294901760
    %v622 = vsub.f32 %v60, %v621
    %v623 = vand.u32 %v622, 4294901760
    %624 = vmatpush1.msra.mxu0 %v623
    %625 = vmatprep.subr.mxu0 0.0
    %v626 = vand.u32 %v61, 4294901760
    %v627 = vsub.f32 %v61, %v626
    %v628 = vand.u32 %v627, 4294901760
    %629 = vmatpush1.msra.mxu0 %v628
    %630 = vmatprep.subr.mxu0 0.0
    %v631 = vand.u32 %v62, 4294901760
    %v632 = vsub.f32 %v62, %v631
    %v633 = vand.u32 %v632, 4294901760
    %634 = vmatpush1.msra.mxu0 %v633
    %635 = vmatprep.subr.mxu0 0.0
    %v636 = vand.u32 %v63, 4294901760
    %v637 = vsub.f32 %v63, %v636
    %v638 = vand.u32 %v637, 4294901760
    %639 = vmatpush1.msra.mxu0 %v638
    %640 = vmatprep.subr.mxu0 0.0
    %v641 = vand.u32 %v64, 4294901760
    %v642 = vsub.f32 %v64, %v641
    %v643 = vand.u32 %v642, 4294901760
    %644 = vmatpush1.msra.mxu0 %v643
    %645 = vmatprep.subr.mxu0 0.0
    %v646 = vand.u32 %v65, 4294901760
    %v647 = vsub.f32 %v65, %v646
    %v648 = vand.u32 %v647, 4294901760
    %649 = vmatpush1.msra.mxu0 %v648
    %650 = vmatprep.subr.mxu0 0.0
    %v651 = vand.u32 %v66, 4294901760
    %v652 = vsub.f32 %v66, %v651
    %v653 = vand.u32 %v652, 4294901760
    %654 = vmatpush1.msra.mxu0 %v653
    %655 = vmatprep.subr.mxu0 0.0
    %v656 = vand.u32 %v67, 4294901760
    %v657 = vsub.f32 %v67, %v656
    %v658 = vand.u32 %v657, 4294901760
    %659 = vmatpush1.msra.mxu0 %v658
    %660 = vmatprep.subr.mxu0 0.0
    %v661 = vand.u32 %v68, 4294901760
    %v662 = vsub.f32 %v68, %v661
    %v663 = vand.u32 %v662, 4294901760
    %664 = vmatpush1.msra.mxu0 %v663
    %665 = vmatprep.subr.mxu0 0.0
    %v666 = vand.u32 %v69, 4294901760
    %v667 = vsub.f32 %v69, %v666
    %v668 = vand.u32 %v667, 4294901760
    %669 = vmatpush1.msra.mxu0 %v668
    %670 = vmatprep.subr.mxu0 0.0
    %v671 = vand.u32 %v70, 4294901760
    %v672 = vsub.f32 %v70, %v671
    %v673 = vand.u32 %v672, 4294901760
    %674 = vmatpush1.msra.mxu0 %v673
    %675 = vmatprep.subr.mxu0 0.0
    %v676 = vand.u32 %v71, 4294901760
    %v677 = vsub.f32 %v71, %v676
    %v678 = vand.u32 %v677, 4294901760
    %679 = vmatpush1.msra.mxu0 %v678
    %680 = vmatprep.subr.mxu0 0.0
    %681 = vmatpush1.msra.mxu0 0.0
    %682 = vmatprep.subr.mxu0 0.0
    %683 = vmatpush1.msra.mxu0 0.0
    %684 = vmatprep.subr.mxu0 0.0
    %685 = vmatpush1.msra.mxu0 0.0
    %686 = vmatprep.subr.mxu0 0.0
    %687 = vmatpush1.msra.mxu0 0.0
    %688 = vmatprep.subr.mxu0 0.0
    %689 = vmatpush1.msra.mxu0 0.0
    %690 = vmatprep.subr.mxu0 0.0
    %691 = vmatpush1.msra.mxu0 0.0
    %692 = vmatprep.subr.mxu0 0.0
    %693 = vmatpush1.msra.mxu0 0.0
    %694 = vmatprep.subr.mxu0 0.0
    %695 = vmatpush1.msra.mxu0 0.0
    %696 = vmatprep.subr.mxu0 0.0
    %697 = vmatpush1.msra.mxu0 0.0
    %698 = vmatprep.subr.mxu0 0.0
    %699 = vmatpush1.msra.mxu0 0.0
    %700 = vmatprep.subr.mxu0 0.0
    %701 = vmatpush1.msra.mxu0 0.0
    %702 = vmatprep.subr.mxu0 0.0
    %703 = vmatpush1.msra.mxu0 0.0
    %704 = vmatprep.subr.mxu0 0.0
    %705 = vmatpush1.msra.mxu0 0.0
    %706 = vmatprep.subr.mxu0 0.0
    %707 = vmatpush1.msra.mxu0 0.0
    %708 = vmatprep.subr.mxu0 0.0
    %709 = vmatpush1.msra.mxu0 0.0
    %710 = vmatprep.subr.mxu0 0.0
    %711 = vmatpush1.msra.mxu0 0.0
    %712 = vmatprep.mubr.f32.mxu0 0.0
    %v713 = vand.u32 %v52, 4294901760
    %714 = vmatmul.mubr.f32.gmra.mrb[0].mxu0 %v713
    %v715 = vpop.f32.mrb[0].mxu0
    %v716 = vadd.f32 %v573, %v715
    %v717 = vpop.f32.mrb[0].mxu0
    %718 = vmatprep.mubr.f32.mxu0 0.0
    %v719 = vand.u32 %v53, 4294901760
    %720 = vmatmul.mubr.f32.gmra.mrb[0].mxu0 %v719
    %v721 = vpop.f32.mrb[0].mxu0
    %v722 = vadd.f32 %v581, %v721
    %v723 = vpop.f32.mrb[0].mxu0
    %724 = vmatprep.mubr.f32.mxu0 0.0
    %v725 = vand.u32 %v54, 4294901760
    %726 = vmatmul.mubr.f32.gmra.mrb[0].mxu0 %v725
    %v727 = vpop.f32.mrb[0].mxu0
    %v728 = vadd.f32 %v589, %v727
    %v729 = vpop.f32.mrb[0].mxu0
    %730 = vmatprep.mubr.f32.mxu0 0.0
    %v731 = vand.u32 %v55, 4294901760
    %732 = vmatmul.mubr.f32.gmra.mrb[0].mxu0 %v731
    %v733 = vpop.f32.mrb[0].mxu0
    %v734 = vadd.f32 %v597, %v733
    %v735 = vpop.f32.mrb[0].mxu0
    %736 = vdwg.mxu0
    %737 = vmatprep.subr.mxu0 0.0
    %v738 = vand.u32 %v56, 4294901760
    %739 = vmatpush1.msra.mxu0 %v738
    %740 = vmatprep.subr.mxu0 0.0
    %v741 = vand.u32 %v57, 4294901760
    %742 = vmatpush1.msra.mxu0 %v741
    %743 = vmatprep.subr.mxu0 0.0
    %v744 = vand.u32 %v58, 4294901760
    %745 = vmatpush1.msra.mxu0 %v744
    %746 = vmatprep.subr.mxu0 0.0
    %v747 = vand.u32 %v59, 4294901760
    %748 = vmatpush1.msra.mxu0 %v747
    %749 = vmatprep.subr.mxu0 0.0
    %v750 = vand.u32 %v60, 4294901760
    %751 = vmatpush1.msra.mxu0 %v750
    %752 = vmatprep.subr.mxu0 0.0
    %v753 = vand.u32 %v61, 4294901760
    %754 = vmatpush1.msra.mxu0 %v753
    %755 = vmatprep.subr.mxu0 0.0
    %v756 = vand.u32 %v62, 4294901760
    %757 = vmatpush1.msra.mxu0 %v756
    %758 = vmatprep.subr.mxu0 0.0
    %v759 = vand.u32 %v63, 4294901760
    %760 = vmatpush1.msra.mxu0 %v759
    %761 = vmatprep.subr.mxu0 0.0
    %v762 = vand.u32 %v64, 4294901760
    %763 = vmatpush1.msra.mxu0 %v762
    %764 = vmatprep.subr.mxu0 0.0
    %v765 = vand.u32 %v65, 4294901760
    %766 = vmatpush1.msra.mxu0 %v765
    %767 = vmatprep.subr.mxu0 0.0
    %v768 = vand.u32 %v66, 4294901760
    %769 = vmatpush1.msra.mxu0 %v768
    %770 = vmatprep.subr.mxu0 0.0
    %v771 = vand.u32 %v67, 4294901760
    %772 = vmatpush1.msra.mxu0 %v771
    %773 = vmatprep.subr.mxu0 0.0
    %v774 = vand.u32 %v68, 4294901760
    %775 = vmatpush1.msra.mxu0 %v774
    %776 = vmatprep.subr.mxu0 0.0
    %v777 = vand.u32 %v69, 4294901760
    %778 = vmatpush1.msra.mxu0 %v777
    %779 = vmatprep.subr.mxu0 0.0
    %v780 = vand.u32 %v70, 4294901760
    %781 = vmatpush1.msra.mxu0 %v780
    %782 = vmatprep.subr.mxu0 0.0
    %v783 = vand.u32 %v71, 4294901760
    %784 = vmatpush1.msra.mxu0 %v783
    %785 = vmatprep.subr.mxu0 0.0
    %786 = vmatpush1.msra.mxu0 0.0
    %787 = vmatprep.subr.mxu0 0.0
    %788 = vmatpush1.msra.mxu0 0.0
    %789 = vmatprep.subr.mxu0 0.0
    %790 = vmatpush1.msra.mxu0 0.0
    %791 = vmatprep.subr.mxu0 0.0
    %792 = vmatpush1.msra.mxu0 0.0
    %793 = vmatprep.subr.mxu0 0.0
    %794 = vmatpush1.msra.mxu0 0.0
    %795 = vmatprep.subr.mxu0 0.0
    %796 = vmatpush1.msra.mxu0 0.0
    %797 = vmatprep.subr.mxu0 0.0
    %798 = vmatpush1.msra.mxu0 0.0
    %799 = vmatprep.subr.mxu0 0.0
    %800 = vmatpush1.msra.mxu0 0.0
    %801 = vmatprep.subr.mxu0 0.0
    %802 = vmatpush1.msra.mxu0 0.0
    %803 = vmatprep.subr.mxu0 0.0
    %804 = vmatpush1.msra.mxu0 0.0
    %805 = vmatprep.subr.mxu0 0.0
    %806 = vmatpush1.msra.mxu0 0.0
    %807 = vmatprep.subr.mxu0 0.0
    %808 = vmatpush1.msra.mxu0 0.0
    %809 = vmatprep.subr.mxu0 0.0
    %810 = vmatpush1.msra.mxu0 0.0
    %811 = vmatprep.subr.mxu0 0.0
    %812 = vmatpush1.msra.mxu0 0.0
    %813 = vmatprep.subr.mxu0 0.0
    %814 = vmatpush1.msra.mxu0 0.0
    %815 = vmatprep.subr.mxu0 0.0
    %816 = vmatpush1.msra.mxu0 0.0
    %817 = vmatprep.mubr.f32.mxu0 0.0
    %v818 = vand.u32 %v52, 4294901760
    %819 = vmatmul.mubr.f32.gmra.mrb[0].mxu0 %v818
    %v820 = vpop.f32.mrb[0].mxu0
    %v821 = vadd.f32 %v716, %v820
    %v822 = vpop.f32.mrb[0].mxu0
    %823 = vmatprep.mubr.f32.mxu0 0.0
    %v824 = vand.u32 %v53, 4294901760
    %825 = vmatmul.mubr.f32.gmra.mrb[0].mxu0 %v824
    %v826 = vpop.f32.mrb[0].mxu0
    %v827 = vadd.f32 %v722, %v826
    %v828 = vpop.f32.mrb[0].mxu0
    %829 = vmatprep.mubr.f32.mxu0 0.0
    %v830 = vand.u32 %v54, 4294901760
    %831 = vmatmul.mubr.f32.gmra.mrb[0].mxu0 %v830
    %v832 = vpop.f32.mrb[0].mxu0
    %v833 = vadd.f32 %v728, %v832
    %v834 = vpop.f32.mrb[0].mxu0
    %835 = vmatprep.mubr.f32.mxu0 0.0
    %v836 = vand.u32 %v55, 4294901760
    %837 = vmatmul.mubr.f32.gmra.mrb[0].mxu0 %v836
    %v838 = vpop.f32.mrb[0].mxu0
    %v839 = vadd.f32 %v734, %v838
    %v840 = vpop.f32.mrb[0].mxu0
    %841 = vdwg.mxu0
    %842 = vst [vmem:[#allocation5] sm:$0xff] %v821
    %843 = vst [vmem:[#allocation5 + $0x8] sm:$0xff] %v827
    %844 = vst [vmem:[#allocation5 + $0x10] sm:$0xff] %v833
    %845 = vst [vmem:[#allocation5 + $0x18] sm:$0xff] %v839
    // Predicated region
    $region14: #{tpu_custom_call.1} parent=1 // pred_check
      _
    $region15: #{tpu_custom_call.1} parent=1 // pred_check_branch
      %847 = sbr.rel (0) target = $region17
    $region16: #{tpu_custom_call.1} parent=1 // pred_region
      %s849 = ssub.s32 512, 512
      %850 = vsyncadd [#allocation4], %s849
      %s851 = sshll.u32 [#allocation5], 4
      %s852 = int_to_ptr.vmem [resolvable:$true] %s851
      %857 = dma.vmem_to_hbm [thread:$0]  %s852, 512, %s2, [#allocation4], 128, 128, 8
    $region17: #{tpu_custom_call.1} parent=1 // pred_fallthru
      _
    // Predicated region
    $region18: #{tpu_custom_call.1} parent=1 // pred_check
      _
    $region19: #{tpu_custom_call.1} parent=1 // pred_check_branch
      %859 = sbr.rel (0) target = $region21
    $region20: #{tpu_custom_call.1} parent=1 // pred_region
      %860 = dma.done [#allocation4], 512
    $region21: #{tpu_custom_call.1} parent=1 // pred_fallthru
      _
    %861 = vsyncpa [#allocation3], 1
    %862 = vsyncpa [#allocation4], 1

</llo_original>
